<compile_context>
chip_gen: v6e
topology: v6e:2x2x1
jax: 0.10.0
libtpu: 0.0.40
codegen_flags: <defaults>
</compile_context>

<pallas_src>
import functools

import jax
import jax.numpy as jnp
from jax import lax
from jax.experimental import pallas as pl
from jax.experimental.pallas import tpu as pltpu

_NEG_BIG = -1e30  # finite "minus infinity" (avoids inf-inf NaNs)


def _nce_kernel(c1q_ref, c2k_ref, c1k_ref, out_ref,
                m_sc, l_sc, pos_sc, *, inv_T: float, tq: int, tk: int,
                compute_dtype):
    qi = pl.program_id(0)
    ki = pl.program_id(1)

    # ---- init accumulators on the first negatives step --------------------
    @pl.when(ki == 0)
    def _():
        m_sc[...] = jnp.full_like(m_sc, _NEG_BIG)
        l_sc[...] = jnp.zeros_like(l_sc)
        pos_sc[...] = jnp.zeros_like(pos_sc)

    # Apply 1/T once to the (tq, D) query tile (cheaper than scaling the two
    # (tq, tk) logit tiles), then cast MXU operands (bf16 by default; the
    # matmul still accumulates in f32).
    c1q = (c1q_ref[...] * inv_T).astype(compute_dtype)   # (tq, D)
    c2k = c2k_ref[...].astype(compute_dtype)             # (tk, D)
    c1k = c1k_ref[...].astype(compute_dtype)             # (tk, D)

    # Two logit tiles via transposed-RHS dot_general (no concat, no transpose).
    dn = (((1,), (1,)), ((), ()))
    s12 = lax.dot_general(c1q, c2k, dn, preferred_element_type=jnp.float32)
    s11 = lax.dot_general(c1q, c1k, dn, preferred_element_type=jnp.float32)

    def _online_update(a, b):
        # Fused: one cross-lane max and one cross-lane sum per step for the
        # pair of logit tiles (elementwise max/add go to the VPU slot).
        m_prev = m_sc[...]
        m_new = jnp.maximum(
            m_prev, jnp.max(jnp.maximum(a, b), axis=1, keepdims=True))
        alpha = jnp.exp(m_prev - m_new)
        l_sc[...] = alpha * l_sc[...] + jnp.sum(
            jnp.exp(a - m_new) + jnp.exp(b - m_new), axis=1, keepdims=True)
        m_sc[...] = m_new

    # Does the global diagonal intersect this (query-tile, negatives-tile)?
    q0 = qi * tq
    k0 = ki * tk
    overlaps = jnp.logical_and(q0 < k0 + tk, k0 < q0 + tq)

    @pl.when(overlaps)
    def _():  # slow path: mask the two diagonal entries, extract the positive
        grow = q0 + lax.broadcasted_iota(jnp.int32, (tq, tk), 0)
        gcol = k0 + lax.broadcasted_iota(jnp.int32, (tq, tk), 1)
        is_diag = grow == gcol
        # The positive logit appears exactly once per row over the full sweep.
        pos_sc[...] += jnp.sum(jnp.where(is_diag, s12, 0.0), axis=1,
                               keepdims=True)
        neg_big = jnp.float32(_NEG_BIG)
        _online_update(jnp.where(is_diag, neg_big, s12),
                       jnp.where(is_diag, neg_big, s11))

    @pl.when(jnp.logical_not(overlaps))
    def _():  # fast path: no diagonal in this tile -> no masking work at all
        _online_update(s12, s11)

    # ---- finalize on the last negatives step ------------------------------
    @pl.when(ki == pl.num_programs(1) - 1)
    def _():
        # loss = log(neg_sum) - pos_logit = m + log(l) - pos_logit
        # TODO(synk): optional lane-dense (1, tq) output layout (transpose the
        # column once here); modest win since this store runs once per q-tile.
        out_ref[...] = m_sc[...] + jnp.log(l_sc[...]) - pos_sc[...]


def _vmem_capacity_bytes() -> int:
    try:
        return int(pltpu.get_tpu_info().vmem_capacity_bytes)
    except Exception:
        return 64 * 1024 * 1024  # conservative (v7x); v5e/v6e have 128 MiB


def _footprint_bytes(tq: int, tk: int, D: int, in_itemsize: int) -> int:
    # double-buffered input tiles + double-buffered (tq,1) output + 3 f32 accs
    return (2 * (tq + 2 * tk) * D * in_itemsize) + (2 * tq * 4) + (3 * tq * 4)


def _choose_tiles(B: int, D: int, in_itemsize: int, vmem_budget: int):
    """D/VMEM-aware tile choice: TK MXU-friendly, TQ as large as fits."""
    for tk_cand in (256, 128):           # 256 fills the v6e/v7x MXU N dim
        if B % tk_cand:
            continue
        fitting = [c for c in (2048, 1024, 512, 256, 128, 64, 32, 16, 8)
                   if c <= B and B % c == 0
                   and _footprint_bytes(c, tk_cand, D, in_itemsize)
                   <= vmem_budget]
        if not fitting:
            continue
        # Prefer the largest TQ that still leaves nq >= 2 (v7x has 2 TCs and
        # the parallel query axis is what shards across them).
        multi = [c for c in fitting if B // c >= 2]
        return (multi[0] if multi else fitting[0]), tk_cand
    return B, B  # tiny-B fallback: single block along each axis


def nce_loss(c1_emb: jax.Array, c2_emb: jax.Array, nce_T: float,
             *, tq: int | None = None, tk: int | None = None,
             use_bf16: bool = True) -> jax.Array:
    """Pallas TPU implementation of NCELoss.forward. Returns (B,) f32 loss."""
    B, D = c1_emb.shape
    assert c2_emb.shape == (B, D), (c1_emb.shape, c2_emb.shape)

    in_itemsize = jnp.dtype(c1_emb.dtype).itemsize
    cap = _vmem_capacity_bytes()
    budget = (3 * cap) // 4  # keep working set well under physical VMEM
    auto_tq, auto_tk = _choose_tiles(B, D, in_itemsize, budget)
    tq = auto_tq if tq is None else tq
    tk = auto_tk if tk is None else tk
    assert B % tq == 0 and B % tk == 0, (B, tq, tk)
    nq, nk = B // tq, B // tk

    footprint = _footprint_bytes(tq, tk, D, in_itemsize)
    vmem_limit = int(min(0.85 * cap, max(32 * 1024 * 1024, 2 * footprint)))

    compute_dtype = jnp.bfloat16 if use_bf16 else jnp.float32
    kernel = functools.partial(
        _nce_kernel, inv_T=1.0 / float(nce_T), tq=tq, tk=tk,
        compute_dtype=compute_dtype)

    # TODO(synk): if profiling shows exposed DMA on v5e (small D / small TQ),
    # add pipeline_mode=pl.Buffered(3) to the two negatives BlockSpecs.
    out = pl.pallas_call(
        kernel,
        out_shape=jax.ShapeDtypeStruct((B, 1), jnp.float32),
        grid_spec=pltpu.PrefetchScalarGridSpec(
            num_scalar_prefetch=0,
            grid=(nq, nk),  # reduction (negatives) axis last
            in_specs=[
                pl.BlockSpec((tq, D), lambda qi, ki: (qi, 0)),  # c1 query tile
                pl.BlockSpec((tk, D), lambda qi, ki: (ki, 0)),  # c2 neg tile
                pl.BlockSpec((tk, D), lambda qi, ki: (ki, 0)),  # c1 neg tile
            ],
            out_specs=pl.BlockSpec((tq, 1), lambda qi, ki: (qi, 0)),
            scratch_shapes=[
                pltpu.VMEM((tq, 1), jnp.float32),  # running max    m
                pltpu.VMEM((tq, 1), jnp.float32),  # running sum    l
                pltpu.VMEM((tq, 1), jnp.float32),  # positive logit
            ],
        ),
        compiler_params=pltpu.CompilerParams(
            dimension_semantics=("parallel", "arbitrary"),
            vmem_limit_bytes=vmem_limit),
        cost_estimate=pl.CostEstimate(
            flops=int(4 * B * B * D),
            transcendentals=int(2 * B * B),
            # queries once + negatives re-streamed once per query tile + out
            bytes_accessed=int(B * D * in_itemsize
                               + nq * 2 * B * D * in_itemsize + B * 4)),
    )(c1_emb, c2_emb, c1_emb)
    return out[:, 0]


def _nce_loss_ref(c1_emb, c2_emb, nce_T):
    """Pure-JAX reference mirroring the PyTorch code exactly (naive exp form)."""
    B = c1_emb.shape[0]
    neg = jnp.concatenate([c2_emb, c1_emb], axis=0)
    sim = jnp.exp(jnp.matmul(c1_emb, neg.T) / nce_T)
    eye = jnp.eye(B, dtype=jnp.float32)
    zeros = jnp.zeros((B, B), dtype=jnp.float32)
    pos_mask = jnp.concatenate([eye, zeros], axis=1)
    id_mask = jnp.concatenate([zeros, eye], axis=1)
    neg_mask = jnp.ones_like(sim) - pos_mask - id_mask
    out = jnp.sum(pos_mask * sim, axis=1) / jnp.sum(neg_mask * sim, axis=1)
    return -jnp.log(out)


if __name__ == "__main__":
    key = jax.random.PRNGKey(0)
    nce_T = 0.1

    def make(k, B, D):
        k1, k2 = jax.random.split(k)
        c1 = jax.random.normal(k1, (B, D), dtype=jnp.float32)
        c2 = jax.random.normal(k2, (B, D), dtype=jnp.float32)
        c1 = c1 / jnp.linalg.norm(c1, axis=1, keepdims=True)
        c2 = c2 / jnp.linalg.norm(c2, axis=1, keepdims=True)
        return c1, c2

    # Case 1: exact-semantics check (f32 MXU path), multi-tile grid with
    # decoupled query/negatives tiles (TQ=16, TK=8) -- exercises the
    # overlap-gated diagonal handling and the online init/update/finalize.
    k1, k2 = jax.random.split(key)
    c1, c2 = make(k1, 32, 64)
    loss = nce_loss(c1, c2, nce_T, tq=16, tk=8, use_bf16=False)
    jax.block_until_ready(loss)
    ref = _nce_loss_ref(c1, c2, nce_T)
    assert loss.shape == (32,)
    assert jnp.allclose(loss, ref, rtol=1e-4, atol=1e-4), (loss, ref)

    # Case 2: default fast path (bf16 operands, auto tile selection,
    # single-block fallback at B=8). bf16 operands => looser tolerance.
    c1s, c2s = make(k2, 8, 32)
    loss_s = nce_loss(c1s, c2s, nce_T)
    jax.block_until_ready(loss_s)
    ref_s = _nce_loss_ref(c1s, c2s, nce_T)
    assert loss_s.shape == (8,)
    assert jnp.allclose(loss_s, ref_s, rtol=5e-2, atol=5e-2), (loss_s, ref_s)

    # Case 3: bf16 path on a multi-tile grid with TK > TQ (negatives tile
    # wider than the query tile), exercising the general overlap test.
    k3, _ = jax.random.split(k2)
    c1b, c2b = make(k3, 32, 64)
    loss_b = nce_loss(c1b, c2b, nce_T, tq=8, tk=16, use_bf16=True)
    jax.block_until_ready(loss_b)
    ref_b = _nce_loss_ref(c1b, c2b, nce_T)
    assert loss_b.shape == (32,)
    assert jnp.allclose(loss_b, ref_b, rtol=5e-2, atol=5e-2), (loss_b, ref_b)

    print("KERNEL_OK")
</pallas_src>

<mosaic_0001>
module attributes {stable_mosaic.version = 11 : i64} {
  func.func @_nce_kernel(%arg0: i32, %arg1: i32, %arg2: memref<16x64xf32, #tpu.memory_space<vmem>>, %arg3: memref<8x64xf32, #tpu.memory_space<vmem>>, %arg4: memref<8x64xf32, #tpu.memory_space<vmem>>, %arg5: memref<16x1xf32, #tpu.memory_space<vmem>>, %arg6: memref<16x1xf32, #tpu.memory_space<vmem>>, %arg7: memref<16x1xf32, #tpu.memory_space<vmem>>, %arg8: memref<16x1xf32, #tpu.memory_space<vmem>>) attributes {dimension_semantics = [#tpu.dimension_semantics<parallel>, #tpu.dimension_semantics<arbitrary>], iteration_bounds = array<i64: 2, 4>, scalar_prefetch = 0 : i64, scratch_operands = 3 : i64, tpu.core_type = #tpu.core_type<tc>, window_params = [{transform_indices = @transform_0, window_bounds = array<i64: 16, 64>}, {transform_indices = @transform_1, window_bounds = array<i64: 8, 64>}, {transform_indices = @transform_2, window_bounds = array<i64: 8, 64>}, {transform_indices = @transform_3, window_bounds = array<i64: 16, 1>}]} {
    %c0_i32 = arith.constant 0 : i32
    %0 = arith.cmpi eq, %arg1, %c0_i32 : i32
    %1 = arith.extui %0 : i1 to i32
    %c0_i32_0 = arith.constant 0 : i32
    %2 = arith.cmpi ne, %1, %c0_i32_0 : i32
    scf.if %2 {
      %cst_13 = arith.constant -1.000000e+30 : f32
      %25 = vector.broadcast %cst_13 : f32 to vector<16x1xf32>
      %c0_14 = arith.constant 0 : index
      %c0_15 = arith.constant 0 : index
      %26 = vector.load %arg6[%c0_14, %c0_15] : memref<16x1xf32, #tpu.memory_space<vmem>>, vector<16x1xf32>
      tpu.vector_store %arg6[%c0_14, %c0_15], %25 {strides = array<i32>} : memref<16x1xf32, #tpu.memory_space<vmem>>, vector<16x1xf32>,
      %cst_16 = arith.constant 0.000000e+00 : f32
      %27 = vector.broadcast %cst_16 : f32 to vector<16x1xf32>
      %c0_17 = arith.constant 0 : index
      %c0_18 = arith.constant 0 : index
      %28 = vector.load %arg7[%c0_17, %c0_18] : memref<16x1xf32, #tpu.memory_space<vmem>>, vector<16x1xf32>
      tpu.vector_store %arg7[%c0_17, %c0_18], %27 {strides = array<i32>} : memref<16x1xf32, #tpu.memory_space<vmem>>, vector<16x1xf32>,
      %cst_19 = arith.constant 0.000000e+00 : f32
      %29 = vector.broadcast %cst_19 : f32 to vector<16x1xf32>
      %c0_20 = arith.constant 0 : index
      %c0_21 = arith.constant 0 : index
      %30 = vector.load %arg8[%c0_20, %c0_21] : memref<16x1xf32, #tpu.memory_space<vmem>>, vector<16x1xf32>
      tpu.vector_store %arg8[%c0_20, %c0_21], %29 {strides = array<i32>} : memref<16x1xf32, #tpu.memory_space<vmem>>, vector<16x1xf32>,
    } else {
    }
    %c0 = arith.constant 0 : index
    %c0_1 = arith.constant 0 : index
    %3 = vector.load %arg2[%c0, %c0_1] : memref<16x64xf32, #tpu.memory_space<vmem>>, vector<16x64xf32>
    %cst = arith.constant 1.000000e+01 : f32
    %4 = vector.broadcast %cst : f32 to vector<16x64xf32>
    %5 = arith.mulf %3, %4 : vector<16x64xf32>
    %c0_2 = arith.constant 0 : index
    %c0_3 = arith.constant 0 : index
    %6 = vector.load %arg3[%c0_2, %c0_3] : memref<8x64xf32, #tpu.memory_space<vmem>>, vector<8x64xf32>
    %c0_4 = arith.constant 0 : index
    %c0_5 = arith.constant 0 : index
    %7 = vector.load %arg4[%c0_4, %c0_5] : memref<8x64xf32, #tpu.memory_space<vmem>>, vector<8x64xf32>
    %cst_6 = arith.constant dense<0.000000e+00> : vector<16x8xf32>
    %8 = tpu.matmul %5, %6, %cst_6 {dimension_numbers = #tpu.dot_dimension_numbers<[1], [1], [0], [0], [0, 0, 1, 0], [], []>} : vector<16x64xf32>, vector<8x64xf32>, vector<16x8xf32> -> vector<16x8xf32>
    %cst_7 = arith.constant dense<0.000000e+00> : vector<16x8xf32>
    %9 = tpu.matmul %5, %7, %cst_7 {dimension_numbers = #tpu.dot_dimension_numbers<[1], [1], [0], [0], [0, 0, 1, 0], [], []>} : vector<16x64xf32>, vector<8x64xf32>, vector<16x8xf32> -> vector<16x8xf32>
    %c16_i32 = arith.constant 16 : i32
    %10 = arith.muli %arg0, %c16_i32 : i32
    %c8_i32 = arith.constant 8 : i32
    %11 = arith.muli %arg1, %c8_i32 : i32
    %c8_i32_8 = arith.constant 8 : i32
    %12 = arith.addi %11, %c8_i32_8 : i32
    %13 = arith.cmpi slt, %10, %12 : i32
    %c16_i32_9 = arith.constant 16 : i32
    %14 = arith.addi %10, %c16_i32_9 : i32
    %15 = arith.cmpi slt, %11, %14 : i32
    %16 = arith.andi %13, %15 : i1
    %17 = arith.extui %16 : i1 to i32
    %c0_i32_10 = arith.constant 0 : i32
    %18 = arith.cmpi ne, %17, %c0_i32_10 : i32
    scf.if %18 {
      %25 = tpu.iota {dimensions = array<i32: 0>} : vector<16x8xi32>
      %26 = vector.broadcast %10 : i32 to vector<16x8xi32>
      %27 = arith.addi %26, %25 : vector<16x8xi32>
      %28 = tpu.iota {dimensions = array<i32: 1>} : vector<16x8xi32>
      %29 = vector.broadcast %11 : i32 to vector<16x8xi32>
      %30 = arith.addi %29, %28 : vector<16x8xi32>
      %31 = arith.cmpi eq, %27, %30 : vector<16x8xi32>
      %c0_13 = arith.constant 0 : index
      %c0_14 = arith.constant 0 : index
      %32 = vector.load %arg8[%c0_13, %c0_14] : memref<16x1xf32, #tpu.memory_space<vmem>>, vector<16x1xf32>
      %cst_15 = arith.constant 0.000000e+00 : f32
      %33 = vector.broadcast %cst_15 : f32 to vector<16x8xf32>
      %34 = arith.select %31, %8, %33 : vector<16x8xi1>, vector<16x8xf32>
      %cst_16 = arith.constant dense<0.000000e+00> : vector<16xf32>
      %35 = vector.multi_reduction <add>, %34, %cst_16 [1] : vector<16x8xf32> to vector<16xf32>
      %36 = vector.shape_cast %35 : vector<16xf32> to vector<16x1xf32>
      %37 = arith.addf %32, %36 : vector<16x1xf32>
      %c0_17 = arith.constant 0 : index
      %c0_18 = arith.constant 0 : index
      %38 = vector.load %arg8[%c0_17, %c0_18] : memref<16x1xf32, #tpu.memory_space<vmem>>, vector<16x1xf32>
      tpu.vector_store %arg8[%c0_17, %c0_18], %37 {strides = array<i32>} : memref<16x1xf32, #tpu.memory_space<vmem>>, vector<16x1xf32>,
      %cst_19 = arith.constant -1.000000e+30 : f32
      %39 = vector.broadcast %cst_19 : f32 to vector<16x8xf32>
      %40 = arith.select %31, %39, %8 : vector<16x8xi1>, vector<16x8xf32>
      %cst_20 = arith.constant -1.000000e+30 : f32
      %41 = vector.broadcast %cst_20 : f32 to vector<16x8xf32>
      %42 = arith.select %31, %41, %9 : vector<16x8xi1>, vector<16x8xf32>
      %c0_21 = arith.constant 0 : index
      %c0_22 = arith.constant 0 : index
      %43 = vector.load %arg6[%c0_21, %c0_22] : memref<16x1xf32, #tpu.memory_space<vmem>>, vector<16x1xf32>
      %44 = arith.maximumf %40, %42 : vector<16x8xf32>
      %cst_23 = arith.constant dense<0xFF800000> : vector<16xf32>
      %45 = vector.multi_reduction <maximumf>, %44, %cst_23 [1] : vector<16x8xf32> to vector<16xf32>
      %46 = vector.shape_cast %45 : vector<16xf32> to vector<16x1xf32>
      %47 = arith.maximumf %43, %46 : vector<16x1xf32>
      %48 = arith.subf %43, %47 : vector<16x1xf32>
      %49 = math.exp %48 : vector<16x1xf32>
      %c0_24 = arith.constant 0 : index
      %c0_25 = arith.constant 0 : index
      %50 = vector.load %arg7[%c0_24, %c0_25] : memref<16x1xf32, #tpu.memory_space<vmem>>, vector<16x1xf32>
      %51 = arith.mulf %49, %50 : vector<16x1xf32>
      %52 = vector.broadcast %47 : vector<16x1xf32> to vector<16x8xf32>
      %53 = arith.subf %40, %52 : vector<16x8xf32>
      %54 = math.exp %53 : vector<16x8xf32>
      %55 = vector.broadcast %47 : vector<16x1xf32> to vector<16x8xf32>
      %56 = arith.subf %42, %55 : vector<16x8xf32>
      %57 = math.exp %56 : vector<16x8xf32>
      %58 = arith.addf %54, %57 : vector<16x8xf32>
      %cst_26 = arith.constant dense<0.000000e+00> : vector<16xf32>
      %59 = vector.multi_reduction <add>, %58, %cst_26 [1] : vector<16x8xf32> to vector<16xf32>
      %60 = vector.shape_cast %59 : vector<16xf32> to vector<16x1xf32>
      %61 = arith.addf %51, %60 : vector<16x1xf32>
      %c0_27 = arith.constant 0 : index
      %c0_28 = arith.constant 0 : index
      %62 = vector.load %arg7[%c0_27, %c0_28] : memref<16x1xf32, #tpu.memory_space<vmem>>, vector<16x1xf32>
      tpu.vector_store %arg7[%c0_27, %c0_28], %61 {strides = array<i32>} : memref<16x1xf32, #tpu.memory_space<vmem>>, vector<16x1xf32>,
      %c0_29 = arith.constant 0 : index
      %c0_30 = arith.constant 0 : index
      %63 = vector.load %arg6[%c0_29, %c0_30] : memref<16x1xf32, #tpu.memory_space<vmem>>, vector<16x1xf32>
      tpu.vector_store %arg6[%c0_29, %c0_30], %47 {strides = array<i32>} : memref<16x1xf32, #tpu.memory_space<vmem>>, vector<16x1xf32>,
    } else {
    }
    %true = arith.constant true
    %19 = arith.xori %16, %true : i1
    %20 = arith.extui %19 : i1 to i32
    %c0_i32_11 = arith.constant 0 : i32
    %21 = arith.cmpi ne, %20, %c0_i32_11 : i32
    scf.if %21 {
      %c0_13 = arith.constant 0 : index
      %c0_14 = arith.constant 0 : index
      %25 = vector.load %arg6[%c0_13, %c0_14] : memref<16x1xf32, #tpu.memory_space<vmem>>, vector<16x1xf32>
      %26 = arith.maximumf %8, %9 : vector<16x8xf32>
      %cst_15 = arith.constant dense<0xFF800000> : vector<16xf32>
      %27 = vector.multi_reduction <maximumf>, %26, %cst_15 [1] : vector<16x8xf32> to vector<16xf32>
      %28 = vector.shape_cast %27 : vector<16xf32> to vector<16x1xf32>
      %29 = arith.maximumf %25, %28 : vector<16x1xf32>
      %30 = arith.subf %25, %29 : vector<16x1xf32>
      %31 = math.exp %30 : vector<16x1xf32>
      %c0_16 = arith.constant 0 : index
      %c0_17 = arith.constant 0 : index
      %32 = vector.load %arg7[%c0_16, %c0_17] : memref<16x1xf32, #tpu.memory_space<vmem>>, vector<16x1xf32>
      %33 = arith.mulf %31, %32 : vector<16x1xf32>
      %34 = vector.broadcast %29 : vector<16x1xf32> to vector<16x8xf32>
      %35 = arith.subf %8, %34 : vector<16x8xf32>
      %36 = math.exp %35 : vector<16x8xf32>
      %37 = vector.broadcast %29 : vector<16x1xf32> to vector<16x8xf32>
      %38 = arith.subf %9, %37 : vector<16x8xf32>
      %39 = math.exp %38 : vector<16x8xf32>
      %40 = arith.addf %36, %39 : vector<16x8xf32>
      %cst_18 = arith.constant dense<0.000000e+00> : vector<16xf32>
      %41 = vector.multi_reduction <add>, %40, %cst_18 [1] : vector<16x8xf32> to vector<16xf32>
      %42 = vector.shape_cast %41 : vector<16xf32> to vector<16x1xf32>
      %43 = arith.addf %33, %42 : vector<16x1xf32>
      %c0_19 = arith.constant 0 : index
      %c0_20 = arith.constant 0 : index
      %44 = vector.load %arg7[%c0_19, %c0_20] : memref<16x1xf32, #tpu.memory_space<vmem>>, vector<16x1xf32>
      tpu.vector_store %arg7[%c0_19, %c0_20], %43 {strides = array<i32>} : memref<16x1xf32, #tpu.memory_space<vmem>>, vector<16x1xf32>,
      %c0_21 = arith.constant 0 : index
      %c0_22 = arith.constant 0 : index
      %45 = vector.load %arg6[%c0_21, %c0_22] : memref<16x1xf32, #tpu.memory_space<vmem>>, vector<16x1xf32>
      tpu.vector_store %arg6[%c0_21, %c0_22], %29 {strides = array<i32>} : memref<16x1xf32, #tpu.memory_space<vmem>>, vector<16x1xf32>,
    } else {
    }
    %c3_i32 = arith.constant 3 : i32
    %22 = arith.cmpi eq, %arg1, %c3_i32 : i32
    %23 = arith.extui %22 : i1 to i32
    %c0_i32_12 = arith.constant 0 : i32
    %24 = arith.cmpi ne, %23, %c0_i32_12 : i32
    scf.if %24 {
      %c0_13 = arith.constant 0 : index
      %c0_14 = arith.constant 0 : index
      %25 = vector.load %arg6[%c0_13, %c0_14] : memref<16x1xf32, #tpu.memory_space<vmem>>, vector<16x1xf32>
      %c0_15 = arith.constant 0 : index
      %c0_16 = arith.constant 0 : index
      %26 = vector.load %arg7[%c0_15, %c0_16] : memref<16x1xf32, #tpu.memory_space<vmem>>, vector<16x1xf32>
      %27 = math.log %26 : vector<16x1xf32>
      %28 = arith.addf %25, %27 : vector<16x1xf32>
      %c0_17 = arith.constant 0 : index
      %c0_18 = arith.constant 0 : index
      %29 = vector.load %arg8[%c0_17, %c0_18] : memref<16x1xf32, #tpu.memory_space<vmem>>, vector<16x1xf32>
      %30 = arith.subf %28, %29 : vector<16x1xf32>
      %c0_19 = arith.constant 0 : index
      %c0_20 = arith.constant 0 : index
      %31 = vector.load %arg5[%c0_19, %c0_20] : memref<16x1xf32, #tpu.memory_space<vmem>>, vector<16x1xf32>
      tpu.vector_store %arg5[%c0_19, %c0_20], %30 {strides = array<i32>} : memref<16x1xf32, #tpu.memory_space<vmem>>, vector<16x1xf32>,
    } else {
    }
    return
  }
  func.func @transform_0(%arg0: i32, %arg1: i32) -> (i32, i32) {
    %c0_i32 = arith.constant 0 : i32
    %c0_i32_0 = arith.constant 0 : i32
    return %arg0, %c0_i32 : i32, i32
  }
  func.func @transform_1(%arg0: i32, %arg1: i32) -> (i32, i32) {
    %c0_i32 = arith.constant 0 : i32
    %c0_i32_0 = arith.constant 0 : i32
    return %arg1, %c0_i32 : i32, i32
  }
  func.func @transform_2(%arg0: i32, %arg1: i32) -> (i32, i32) {
    %c0_i32 = arith.constant 0 : i32
    %c0_i32_0 = arith.constant 0 : i32
    return %arg1, %c0_i32 : i32, i32
  }
  func.func @transform_3(%arg0: i32, %arg1: i32) -> (i32, i32) {
    %c0_i32 = arith.constant 0 : i32
    %c0_i32_0 = arith.constant 0 : i32
    return %arg0, %c0_i32 : i32, i32
  }
}

</mosaic_0001>

<llo_original>
// kernel: tpu_custom_call.1
$region0: #{tpu_custom_call.1}
  #allocation0 [shape = 'u32[]', space=smem, size = 0x4, offset = 0x4, fixed_abs, tag = 'smem constant byte address 0x4 - core index']
  #allocation1 [shape = 'u32[144,128]{1,0:T(1,128)}', space=vmem, size = 0x12000, scoped, tag = 'internal scratch']
  #allocation2 [shape = 'f32[16,1]{1,0:T(8,128)}', space=vmem, size = 0x2000, scoped, tag = 'scratch operand']
  #allocation3 [shape = 'f32[16,1]{1,0:T(8,128)}', space=vmem, size = 0x2000, scoped, tag = 'scratch operand']
  #allocation4 [shape = 'f32[16,1]{1,0:T(8,128)}', space=vmem, size = 0x2000, scoped, tag = 'scratch operand']
  %s0 = inlined_call_operand.hbm [shape: f32[32,64], index: 0, kind: input, shape index: {}]
  %s1 = inlined_call_operand.hbm [shape: f32[32,64], index: 1, kind: input, shape index: {}]
  %s2 = inlined_call_operand.hbm [shape: f32[32,64], index: 2, kind: input, shape index: {}]
  %s3 = inlined_call_operand.vmem [shape: f32[32,1], index: 3, kind: output, shape index: {}]
  %s4 = sld [smem:[#allocation0]]
  $region73: #{tpu_custom_call.1} parent=0
    _
  %s6 = ssub.s32 1, %s4
  %s7 = scalar_select 0, %s6, %s4
  $region1: #{tpu_custom_call.1} parent=0
    #allocation5 [shape = 'u8[16384]{0}', space=vmem, size = 0x4000, scoped, tag = 'input window, operand 0']
    #allocation6 [shape = 's32[2]{0}', space=sflag, size = 0x8, scoped, tag = 'scoped memory for tpu_custom_call.1']
    #allocation7 [shape = 'u8[8192]{0}', space=vmem, size = 0x2000, scoped, tag = 'input window, operand 1']
    #allocation8 [shape = 's32[2]{0}', space=sflag, size = 0x8, scoped, tag = 'scoped memory for tpu_custom_call.1']
    #allocation9 [shape = 'u8[8192]{0}', space=vmem, size = 0x2000, scoped, tag = 'input window, operand 2']
    %8 = vsyncpa [#allocation6], 0
    %s9 = scalar_lea.sflag [#allocation6], 1
    %10 = vsyncpa %s9, 0
    %11 = vsyncpa [#allocation8], 0
    %s12 = scalar_lea.sflag [#allocation8], 1
    %13 = vsyncpa %s12, 0
    loop: start=0, step=1, limit=10
    $region2: #{tpu_custom_call.1} parent=1 // loop_pre_header
      _
    $region3: #{tpu_custom_call.1} parent=1 // loop_header
      %s15 = sphi 0, %s19
      %p16 = scmp.ge.s32.totalorder %s15, 10
      %s22 = sphi 0, %s34
      %s23 = sphi 0, %s30
      %s24 = sphi 0, %s22
      %s25 = sphi 0, %s23
      %s26 = sphi 0, %s24
      %s27 = sphi 0, %s25
      %s37 = sphi 0, %s39
      %s40 = sphi 0, %s37
      %s41 = sphi 0, %s40
      %s57 = sphi 0, %s41
      %s63 = sphi 0, %s65
      %s66 = sphi 0, %s63
      %s67 = sphi 0, %s66
      %s83 = sphi 0, %s67
      %s89 = sphi 0, %s91
      %s92 = sphi 0, %s89
      %s93 = sphi 0, %s92
      %s109 = sphi 0, %s93
      %s115 = sphi 0, %s117
      %s118 = sphi 0, %s115
      %s119 = sphi 0, %s118
      %s135 = sphi 0, %s119
    $region4: #{tpu_custom_call.1} parent=1 // loop_header_branch
      %18 = sbr.rel (%p16) target = $region8
    $region5: #{tpu_custom_call.1} parent=1 // loop_body
      %s20 = ssub.s32 %s15, 1
      %s21 = ssub.s32 %s15, 2
      %s28 = sadd.s32 1, %s23
      %p29 = scmp.ge.s32.totalorder %s28, 4
      %s30 = scalar_select %p29, 0, %s28
      %s31 = sadd.s32 1, %s22
      %s32 = scalar_select %p29, %s31, %s22
      %p33 = scmp.ge.s32.totalorder %s32, 2
      %s34 = scalar_select %p33, 0, %s32
      %s35 = ssub.s32 %s22, %s34
      %p36 = scmp.eq.s32.totalorder %s35, 0
      %s38 = sadd.s32 %s37, 1
      %s39 = scalar_select %p36, %s37, %s38
      %p42 = pneg %p36
      %p43 = scmp.eq.s32.totalorder %s15, 7
      %p44 = por %p42, %p43
      %p45 = scmp.ne.s32.totalorder %s37, %s40
      %p46 = scmp.eq.s32.totalorder %s15, 0
      %p47 = por %p45, %p46
      %p48 = scmp.ne.s32.totalorder %s37, %s40
      %p49 = scmp.eq.s32.totalorder %s20, 7
      %p50 = por %p48, %p49
      %p51 = scmp.ne.s32.totalorder %s40, %s41
      %p52 = scmp.eq.s32.totalorder %s20, 0
      %p53 = por %p51, %p52
      %p54 = scmp.ne.s32.totalorder %s40, %s41
      %p55 = scmp.eq.s32.totalorder %s21, 7
      %p56 = por %p54, %p55
      %p58 = scmp.ne.s32.totalorder %s41, %s57
      %p59 = scmp.eq.s32.totalorder %s21, 0
      %p60 = por %p58, %p59
      %s61 = ssub.s32 %s23, %s30
      %p62 = scmp.eq.s32.totalorder %s61, 0
      %s64 = sadd.s32 %s63, 1
      %s65 = scalar_select %p62, %s63, %s64
      %p68 = pneg %p62
      %p69 = scmp.eq.s32.totalorder %s15, 7
      %p70 = por %p68, %p69
      %p71 = scmp.ne.s32.totalorder %s63, %s66
      %p72 = scmp.eq.s32.totalorder %s15, 0
      %p73 = por %p71, %p72
      %p74 = scmp.ne.s32.totalorder %s63, %s66
      %p75 = scmp.eq.s32.totalorder %s20, 7
      %p76 = por %p74, %p75
      %p77 = scmp.ne.s32.totalorder %s66, %s67
      %p78 = scmp.eq.s32.totalorder %s20, 0
      %p79 = por %p77, %p78
      %p80 = scmp.ne.s32.totalorder %s66, %s67
      %p81 = scmp.eq.s32.totalorder %s21, 7
      %p82 = por %p80, %p81
      %p84 = scmp.ne.s32.totalorder %s67, %s83
      %p85 = scmp.eq.s32.totalorder %s21, 0
      %p86 = por %p84, %p85
      %s87 = ssub.s32 %s23, %s30
      %p88 = scmp.eq.s32.totalorder %s87, 0
      %s90 = sadd.s32 %s89, 1
      %s91 = scalar_select %p88, %s89, %s90
      %p94 = pneg %p88
      %p95 = scmp.eq.s32.totalorder %s15, 7
      %p96 = por %p94, %p95
      %p97 = scmp.ne.s32.totalorder %s89, %s92
      %p98 = scmp.eq.s32.totalorder %s15, 0
      %p99 = por %p97, %p98
      %p100 = scmp.ne.s32.totalorder %s89, %s92
      %p101 = scmp.eq.s32.totalorder %s20, 7
      %p102 = por %p100, %p101
      %p103 = scmp.ne.s32.totalorder %s92, %s93
      %p104 = scmp.eq.s32.totalorder %s20, 0
      %p105 = por %p103, %p104
      %p106 = scmp.ne.s32.totalorder %s92, %s93
      %p107 = scmp.eq.s32.totalorder %s21, 7
      %p108 = por %p106, %p107
      %p110 = scmp.ne.s32.totalorder %s93, %s109
      %p111 = scmp.eq.s32.totalorder %s21, 0
      %p112 = por %p110, %p111
      %s113 = ssub.s32 %s22, %s34
      %p114 = scmp.eq.s32.totalorder %s113, 0
      %s116 = sadd.s32 %s115, 1
      %s117 = scalar_select %p114, %s115, %s116
      %p120 = pneg %p114
      %p121 = scmp.eq.s32.totalorder %s15, 7
      %p122 = por %p120, %p121
      %p123 = scmp.ne.s32.totalorder %s115, %s118
      %p124 = scmp.eq.s32.totalorder %s15, 0
      %p125 = por %p123, %p124
      %p126 = scmp.ne.s32.totalorder %s115, %s118
      %p127 = scmp.eq.s32.totalorder %s20, 7
      %p128 = por %p126, %p127
      %p129 = scmp.ne.s32.totalorder %s118, %s119
      %p130 = scmp.eq.s32.totalorder %s20, 0
      %p131 = por %p129, %p130
      %p132 = scmp.ne.s32.totalorder %s118, %s119
      %p133 = scmp.eq.s32.totalorder %s21, 7
      %p134 = por %p132, %p133
      %p136 = scmp.ne.s32.totalorder %s119, %s135
      %p137 = scmp.eq.s32.totalorder %s21, 0
      %p138 = por %p136, %p137
      %p139 = scmp.le.s32.totalorder 1, %s15
      %p140 = scmp.lt.s32.totalorder %s15, 9
      %p141 = pnand %p139, %p140
      %p142 = pneg %p141
      // Predicated region
      $region9: #{tpu_custom_call.1} parent=5 // pred_check
        _
      $region10: #{tpu_custom_call.1} parent=5 // pred_check_branch
        %144 = sbr.rel (%p141) target = $region12
      $region11: #{tpu_custom_call.1} parent=5 // pred_region
        %s145 = ssub.s32 %s15, 1
      $region12: #{tpu_custom_call.1} parent=5 // pred_fallthru
        _
      %p146 = scmp.lt.s32.totalorder %s15, 8
      // Predicated region
      $region13: #{tpu_custom_call.1} parent=5 // pred_check
        %p147 = pneg %p146
      $region14: #{tpu_custom_call.1} parent=5 // pred_check_branch
        %149 = sbr.rel (%p147) target = $region16
      $region15: #{tpu_custom_call.1} parent=5 // pred_region
        // Predicated region
        $region17: #{tpu_custom_call.1} parent=15 // pred_check
          %p150 = pneg %p47
        $region18: #{tpu_custom_call.1} parent=15 // pred_check_branch
          %152 = sbr.rel (%p150) target = $region20
        $region19: #{tpu_custom_call.1} parent=15 // pred_region
          %s153 = sand.u32 %s37, 1
          %s154 = scalar_lea.sflag [#allocation6], %s153
          %s155 = sand.u32 %s37, 1
          %s156 = smul.addr %s155, 16
          %s157 = scalar_lea.vmem [#allocation5], %s156
          %s158 = smul.u32 2, %s22
          %s160 = ssub.s32 256, 256
          %161 = vsyncadd %s154, %s160
          %s162 = smul.addr %s158, 128
          %s163 = scalar_lea.hbm %s0, %s162
          %s164 = sshll.u32 %s157, 4
          %s165 = int_to_ptr.vmem [resolvable:$true] %s164
          %170 = dma.hbm_to_vmem [thread:$0]  %s163, 256, %s165, %s154, 128, 128, 8
        $region20: #{tpu_custom_call.1} parent=15 // pred_fallthru
          _
        // Predicated region
        $region21: #{tpu_custom_call.1} parent=15 // pred_check
          %p171 = pneg %p73
        $region22: #{tpu_custom_call.1} parent=15 // pred_check_branch
          %173 = sbr.rel (%p171) target = $region24
        $region23: #{tpu_custom_call.1} parent=15 // pred_region
          %s174 = sand.u32 %s15, 1
          %s175 = scalar_lea.sflag [#allocation8], %s174
          %s176 = sand.u32 %s63, 1
          %s177 = smul.addr %s176, 8
          %s178 = scalar_lea.vmem [#allocation7], %s177
          %s180 = ssub.s32 128, 128
          %181 = vsyncadd %s175, %s180
          %s182 = smul.addr %s23, 128
          %s183 = scalar_lea.hbm %s1, %s182
          %s185 = sshll.u32 %s178, 4
          %s186 = int_to_ptr.vmem [resolvable:$true] %s185
          %188 = dma.hbm_to_vmem [thread:$0]  %s183, 128, %s186, %s175
        $region24: #{tpu_custom_call.1} parent=15 // pred_fallthru
          _
        // Predicated region
        $region25: #{tpu_custom_call.1} parent=15 // pred_check
          %p189 = pneg %p99
        $region26: #{tpu_custom_call.1} parent=15 // pred_check_branch
          %191 = sbr.rel (%p189) target = $region28
        $region27: #{tpu_custom_call.1} parent=15 // pred_region
          %s192 = sand.u32 %s15, 1
          %s193 = scalar_lea.sflag [#allocation8], %s192
          %s194 = sand.u32 %s89, 1
          %s195 = smul.addr %s194, 8
          %s196 = scalar_lea.vmem [#allocation9], %s195
          %s198 = ssub.s32 128, 128
          %199 = vsyncadd %s193, %s198
          %s200 = smul.addr %s23, 128
          %s201 = scalar_lea.hbm %s2, %s200
          %s203 = sshll.u32 %s196, 4
          %s204 = int_to_ptr.vmem [resolvable:$true] %s203
          %206 = dma.hbm_to_vmem [thread:$0]  %s201, 128, %s204, %s193
        $region28: #{tpu_custom_call.1} parent=15 // pred_fallthru
          _
      $region16: #{tpu_custom_call.1} parent=5 // pred_fallthru
        _
      %p207 = scmp.le.s32.totalorder 1, %s15
      %p208 = scmp.lt.s32.totalorder %s15, 9
      %p209 = pnand %p207, %p208
      %p210 = pneg %p209
      // Predicated region
      $region29: #{tpu_custom_call.1} parent=5 // pred_check
        _
      $region30: #{tpu_custom_call.1} parent=5 // pred_check_branch
        %212 = sbr.rel (%p209) target = $region32
      $region31: #{tpu_custom_call.1} parent=5 // pred_region
        %s213 = ssub.s32 %s15, 1
        %s214 = sand.u32 %s40, 1
        %s215 = scalar_lea.sflag [#allocation6], %s214
        %s216 = sand.u32 %s40, 1
        %s217 = smul.addr %s216, 16
        %s218 = scalar_lea.vmem [#allocation5], %s217
        // Predicated region
        $region33: #{tpu_custom_call.1} parent=31 // pred_check
          %p219 = pneg %p53
        $region34: #{tpu_custom_call.1} parent=31 // pred_check_branch
          %221 = sbr.rel (%p219) target = $region36
        $region35: #{tpu_custom_call.1} parent=31 // pred_region
          %222 = dma.done %s215, 256
        $region36: #{tpu_custom_call.1} parent=31 // pred_fallthru
          _
        %s223 = sand.u32 %s20, 1
        %s224 = scalar_lea.sflag [#allocation8], %s223
        %s225 = sand.u32 %s66, 1
        %s226 = smul.addr %s225, 8
        %s227 = scalar_lea.vmem [#allocation7], %s226
        // Predicated region
        $region37: #{tpu_custom_call.1} parent=31 // pred_check
          %p228 = pneg %p79
        $region38: #{tpu_custom_call.1} parent=31 // pred_check_branch
          %230 = sbr.rel (%p228) target = $region40
        $region39: #{tpu_custom_call.1} parent=31 // pred_region
          %231 = dma.done %s224, 128
        $region40: #{tpu_custom_call.1} parent=31 // pred_fallthru
          _
        %s232 = sand.u32 %s20, 1
        %s233 = scalar_lea.sflag [#allocation8], %s232
        %s234 = sand.u32 %s92, 1
        %s235 = smul.addr %s234, 8
        %s236 = scalar_lea.vmem [#allocation9], %s235
        // Predicated region
        $region41: #{tpu_custom_call.1} parent=31 // pred_check
          %p237 = pneg %p105
        $region42: #{tpu_custom_call.1} parent=31 // pred_check_branch
          %239 = sbr.rel (%p237) target = $region44
        $region43: #{tpu_custom_call.1} parent=31 // pred_region
          %240 = dma.done %s233, 128
        $region44: #{tpu_custom_call.1} parent=31 // pred_fallthru
          _
        %s241 = sand.u32 %s40, 1
        %s242 = scalar_lea.sflag [#allocation6], %s241
        %s243 = sand.u32 %s40, 1
        %s244 = smul.addr %s243, 16
        %s245 = scalar_lea.vmem [#allocation5], %s244
        %p246 = pneg %p53
        %p247 = pneg %p50
        %s248 = sand.u32 %s20, 1
        %s249 = scalar_lea.sflag [#allocation8], %s248
        %s250 = sand.u32 %s66, 1
        %s251 = smul.addr %s250, 8
        %s252 = scalar_lea.vmem [#allocation7], %s251
        %p253 = pneg %p79
        %p254 = pneg %p76
        %s255 = sand.u32 %s20, 1
        %s256 = scalar_lea.sflag [#allocation8], %s255
        %s257 = sand.u32 %s92, 1
        %s258 = smul.addr %s257, 8
        %s259 = scalar_lea.vmem [#allocation9], %s258
        %p260 = pneg %p105
        %p261 = pneg %p102
        %p262 = pneg %p131
        %p263 = pneg %p128
        %s264 = smul.u32 2, %s24
        %p265 = scmp.lt.s32.totalorder %s264, 3
        %s266 = scalar_select %p265, %s264, 3
        %s267 = smul.addr %s266, 8
        %s268 = scalar_lea.vmem %s3, %s267
        %s269 = smul.u32 2, %s24
        %s270 = smul.u32 2, %s24
        %p271 = scmp.lt.s32.totalorder %s270, 3
        %s272 = scalar_select %p271, %s270, 3
        %s273 = smul.addr %s272, 8
        %s274 = scalar_lea.vmem %s3, %s273
        %s275 = smul.u32 2, %s24
        %p276 = scmp.eq.s32.totalorder %s25, 0
        // Predicated region
        $region45: #{tpu_custom_call.1} parent=31 // pred_check
          %p277 = pneg %p276
        $region46: #{tpu_custom_call.1} parent=31 // pred_check_branch
          %279 = sbr.rel (%p277) target = $region48
        $region47: #{tpu_custom_call.1} parent=31 // pred_region
          %vm280 = vcmask 7168
          %281 = vst.msk [vmem:[#allocation2] sm:$0xff] %vm280, -1e+30
          %282 = vst.msk [vmem:[#allocation2 + $0x8] sm:$0xff] %vm280, -1e+30
          %283 = vst.msk [vmem:[#allocation3] sm:$0xff] %vm280, 0.0
          %284 = vst.msk [vmem:[#allocation3 + $0x8] sm:$0xff] %vm280, 0.0
          %285 = vst.msk [vmem:[#allocation4] sm:$0xff] %vm280, 0.0
          %286 = vst.msk [vmem:[#allocation4 + $0x8] sm:$0xff] %vm280, 0.0
        $region48: #{tpu_custom_call.1} parent=31 // pred_fallthru
          _
        %v287 = vld [vmem:[%s218] sm:$0xff]
        %v288 = vld [vmem:[%s218 + $0x8] sm:$0xff]
        %v289 = vmul.f32 %v287, 10.0
        %v290 = vmul.f32 %v288, 10.0
        %v291 = vld [vmem:[%s227] sm:$0xff]
        %v292 = vld [vmem:[%s236] sm:$0xff]
        %vm293 = vcmask 523264
        %v295 = vsel %vm293, %v289, 0
        %v298 = vsel %vm293, %v290, 0
        %v301 = vsel %vm293, %v291, 0
        %303 = vmatprep.subr.mxu0 0.0
        %304 = vmatpush1.xpose.msra.mxu0 0.0
        %305 = vmatprep.subr.mxu0 0.0
        %306 = vmatpush1.xpose.msra.mxu0 0.0
        %307 = vmatprep.subr.mxu0 0.0
        %308 = vmatpush1.xpose.msra.mxu0 0.0
        %309 = vmatprep.subr.mxu0 0.0
        %310 = vmatpush1.xpose.msra.mxu0 0.0
        %311 = vmatprep.subr.mxu0 0.0
        %312 = vmatpush1.xpose.msra.mxu0 0.0
        %313 = vmatprep.subr.mxu0 0.0
        %314 = vmatpush1.xpose.msra.mxu0 0.0
        %315 = vmatprep.subr.mxu0 0.0
        %316 = vmatpush1.xpose.msra.mxu0 0.0
        %317 = vmatprep.subr.mxu0 0.0
        %318 = vmatpush1.xpose.msra.mxu0 0.0
        %319 = vmatprep.subr.mxu0 0.0
        %320 = vmatpush1.xpose.msra.mxu0 0.0
        %321 = vmatprep.subr.mxu0 0.0
        %322 = vmatpush1.xpose.msra.mxu0 0.0
        %323 = vmatprep.subr.mxu0 0.0
        %324 = vmatpush1.xpose.msra.mxu0 0.0
        %325 = vmatprep.subr.mxu0 0.0
        %326 = vmatpush1.xpose.msra.mxu0 0.0
        %327 = vmatprep.subr.mxu0 0.0
        %328 = vmatpush1.xpose.msra.mxu0 0.0
        %329 = vmatprep.subr.mxu0 0.0
        %330 = vmatpush1.xpose.msra.mxu0 0.0
        %331 = vmatprep.subr.mxu0 0.0
        %332 = vmatpush1.xpose.msra.mxu0 0.0
        %333 = vmatprep.subr.mxu0 0.0
        %334 = vmatpush1.xpose.msra.mxu0 %v301
        %335 = vmatprep.subr.mxu0 0.0
        %336 = vmatpush2.xpose.msra.mxu0 0.0
        %337 = vmatprep.subr.mxu0 0.0
        %338 = vmatpush2.xpose.msra.mxu0 0.0
        %339 = vmatprep.subr.mxu0 0.0
        %340 = vmatpush2.xpose.msra.mxu0 0.0
        %341 = vmatprep.subr.mxu0 0.0
        %342 = vmatpush2.xpose.msra.mxu0 0.0
        %343 = vmatprep.subr.mxu0 0.0
        %344 = vmatpush2.xpose.msra.mxu0 0.0
        %345 = vmatprep.subr.mxu0 0.0
        %346 = vmatpush2.xpose.msra.mxu0 0.0
        %347 = vmatprep.subr.mxu0 0.0
        %348 = vmatpush2.xpose.msra.mxu0 0.0
        %349 = vmatprep.subr.mxu0 0.0
        %350 = vmatpush2.xpose.msra.mxu0 0.0
        %351 = vmatprep.subr.mxu0 0.0
        %352 = vmatpush2.xpose.msra.mxu0 0.0
        %353 = vmatprep.subr.mxu0 0.0
        %354 = vmatpush2.xpose.msra.mxu0 0.0
        %355 = vmatprep.subr.mxu0 0.0
        %356 = vmatpush2.xpose.msra.mxu0 0.0
        %357 = vmatprep.subr.mxu0 0.0
        %358 = vmatpush2.xpose.msra.mxu0 0.0
        %359 = vmatprep.subr.mxu0 0.0
        %360 = vmatpush2.xpose.msra.mxu0 0.0
        %361 = vmatprep.subr.mxu0 0.0
        %362 = vmatpush2.xpose.msra.mxu0 0.0
        %363 = vmatprep.subr.mxu0 0.0
        %364 = vmatpush2.xpose.msra.mxu0 0.0
        %365 = vmatprep.subr.mxu0 0.0
        %366 = vmatpush2.xpose.msra.mxu0 0.0
        %367 = vmatprep.mubr.f32.mxu0 0.0
        %368 = vmatmul.mubr.f32.gmra.mxu0 %v295
        %v369 = vpop.f32.mrf.mxu0
        %v370 = vadd.f32 0.0, %v369
        %v371 = vpop.f32.mrf.mxu0
        %372 = vmatprep.mubr.f32.mxu0 0.0
        %373 = vmatmul.mubr.f32.gmra.mxu0 %v298
        %v374 = vpop.f32.mrf.mxu0
        %v375 = vadd.f32 0.0, %v374
        %v376 = vpop.f32.mrf.mxu0
        %377 = vdwg.mxu0
        %v379 = vsel %vm293, %v292, 0
        %381 = vmatprep.subr.mxu0 0.0
        %382 = vmatpush1.xpose.msra.mxu0 0.0
        %383 = vmatprep.subr.mxu0 0.0
        %384 = vmatpush1.xpose.msra.mxu0 0.0
        %385 = vmatprep.subr.mxu0 0.0
        %386 = vmatpush1.xpose.msra.mxu0 0.0
        %387 = vmatprep.subr.mxu0 0.0
        %388 = vmatpush1.xpose.msra.mxu0 0.0
        %389 = vmatprep.subr.mxu0 0.0
        %390 = vmatpush1.xpose.msra.mxu0 0.0
        %391 = vmatprep.subr.mxu0 0.0
        %392 = vmatpush1.xpose.msra.mxu0 0.0
        %393 = vmatprep.subr.mxu0 0.0
        %394 = vmatpush1.xpose.msra.mxu0 0.0
        %395 = vmatprep.subr.mxu0 0.0
        %396 = vmatpush1.xpose.msra.mxu0 0.0
        %397 = vmatprep.subr.mxu0 0.0
        %398 = vmatpush1.xpose.msra.mxu0 0.0
        %399 = vmatprep.subr.mxu0 0.0
        %400 = vmatpush1.xpose.msra.mxu0 0.0
        %401 = vmatprep.subr.mxu0 0.0
        %402 = vmatpush1.xpose.msra.mxu0 0.0
        %403 = vmatprep.subr.mxu0 0.0
        %404 = vmatpush1.xpose.msra.mxu0 0.0
        %405 = vmatprep.subr.mxu0 0.0
        %406 = vmatpush1.xpose.msra.mxu0 0.0
        %407 = vmatprep.subr.mxu0 0.0
        %408 = vmatpush1.xpose.msra.mxu0 0.0
        %409 = vmatprep.subr.mxu0 0.0
        %410 = vmatpush1.xpose.msra.mxu0 0.0
        %411 = vmatprep.subr.mxu0 0.0
        %412 = vmatpush1.xpose.msra.mxu0 %v379
        %413 = vmatprep.subr.mxu0 0.0
        %414 = vmatpush2.xpose.msra.mxu0 0.0
        %415 = vmatprep.subr.mxu0 0.0
        %416 = vmatpush2.xpose.msra.mxu0 0.0
        %417 = vmatprep.subr.mxu0 0.0
        %418 = vmatpush2.xpose.msra.mxu0 0.0
        %419 = vmatprep.subr.mxu0 0.0
        %420 = vmatpush2.xpose.msra.mxu0 0.0
        %421 = vmatprep.subr.mxu0 0.0
        %422 = vmatpush2.xpose.msra.mxu0 0.0
        %423 = vmatprep.subr.mxu0 0.0
        %424 = vmatpush2.xpose.msra.mxu0 0.0
        %425 = vmatprep.subr.mxu0 0.0
        %426 = vmatpush2.xpose.msra.mxu0 0.0
        %427 = vmatprep.subr.mxu0 0.0
        %428 = vmatpush2.xpose.msra.mxu0 0.0
        %429 = vmatprep.subr.mxu0 0.0
        %430 = vmatpush2.xpose.msra.mxu0 0.0
        %431 = vmatprep.subr.mxu0 0.0
        %432 = vmatpush2.xpose.msra.mxu0 0.0
        %433 = vmatprep.subr.mxu0 0.0
        %434 = vmatpush2.xpose.msra.mxu0 0.0
        %435 = vmatprep.subr.mxu0 0.0
        %436 = vmatpush2.xpose.msra.mxu0 0.0
        %437 = vmatprep.subr.mxu0 0.0
        %438 = vmatpush2.xpose.msra.mxu0 0.0
        %439 = vmatprep.subr.mxu0 0.0
        %440 = vmatpush2.xpose.msra.mxu0 0.0
        %441 = vmatprep.subr.mxu0 0.0
        %442 = vmatpush2.xpose.msra.mxu0 0.0
        %443 = vmatprep.subr.mxu0 0.0
        %444 = vmatpush2.xpose.msra.mxu0 0.0
        %445 = vmatprep.mubr.f32.mxu0 0.0
        %446 = vmatmul.mubr.f32.gmra.mxu0 %v295
        %v447 = vpop.f32.mrf.mxu0
        %v448 = vadd.f32 0.0, %v447
        %v449 = vpop.f32.mrf.mxu0
        %450 = vmatprep.mubr.f32.mxu0 0.0
        %451 = vmatmul.mubr.f32.gmra.mxu0 %v298
        %v452 = vpop.f32.mrf.mxu0
        %v453 = vadd.f32 0.0, %v452
        %v454 = vpop.f32.mrf.mxu0
        %455 = vdwg.mxu0
        %s456 = smul.u32 %s24, 16
        %s457 = smul.u32 %s25, 8
        %s458 = sadd.s32 %s457, 8
        %p459 = scmp.lt.s32.totalorder %s456, %s458
        %s460 = sadd.s32 %s456, 16
        %p461 = scmp.lt.s32.totalorder %s457, %s460
        %p462 = pnand %p459, %p461
        %p463 = pneg %p462
        // Predicated region
        $region49: #{tpu_custom_call.1} parent=31 // pred_check
          _
        $region50: #{tpu_custom_call.1} parent=31 // pred_check_branch
          %465 = sbr.rel (%p462) target = $region52
        $region51: #{tpu_custom_call.1} parent=31 // pred_region
          %v466 = vlaneseq
          %v467 = vshrl.u32 %v466, 7
          %v468 = vadd.s32 %v467, 8
          %v469 = vstv %s456
          %v470 = vadd.s32 %v469, %v467
          %v471 = vadd.s32 %v469, %v468
          %v472 = vlaneseq
          %v473 = vand.u32 %v472, 127
          %v474 = vstv %s457
          %v475 = vadd.s32 %v474, %v473
          %vm476 = vcmp.eq.s32.totalorder %v470, %v475
          %vm477 = vcmp.eq.s32.totalorder %v471, %v475
          %v478 = vld [vmem:[#allocation4] sm:$0xff]
          %v479 = vld [vmem:[#allocation4 + $0x8] sm:$0xff]
          %v480 = vsel %vm476, %v370, 0.0
          %v481 = vsel %vm477, %v375, 0.0
          %vm482 = vcmask 64512
          %v483 = vsel %vm482, %v480, 0.0
          %484 = vadd.xlane.f32.xlu0 %v483
          %v485 = vpop.xlane.xlu0 %484
          %v486 = vsel %vm482, %v481, 0.0
          %487 = vadd.xlane.f32.xlu0 %v486
          %v488 = vpop.xlane.xlu0 %487
          %v489 = vadd.f32 %v478, %v485
          %v490 = vadd.f32 %v479, %v488
          %vm491 = vcmask 7168
          %492 = vst.msk [vmem:[#allocation4] sm:$0xff] %vm491, %v489
          %493 = vst.msk [vmem:[#allocation4 + $0x8] sm:$0xff] %vm491, %v490
          %v494 = vsel %vm476, -1e+30, %v370
          %v495 = vsel %vm477, -1e+30, %v375
          %v496 = vsel %vm476, -1e+30, %v448
          %v497 = vsel %vm477, -1e+30, %v453
          %v498 = vld [vmem:[#allocation2] sm:$0xff]
          %v499 = vld [vmem:[#allocation2 + $0x8] sm:$0xff]
          %v500 = vmax.f32 %v494, %v496
          %v501 = vmax.f32 %v495, %v497
          %v502 = vsel %vm482, %v500, -inf
          %503 = vmax.xlane.f32.xlu0 %v502
          %v504 = vpop.xlane.xlu0 %503
          %v505 = vsel %vm482, %v501, -inf
          %506 = vmax.xlane.f32.xlu0 %v505
          %v507 = vpop.xlane.xlu0 %506
          %v508 = vmax.f32 %v498, %v504
          %v509 = vmax.f32 %v499, %v507
          %v510 = vsub.f32 %v498, %v508
          %v511 = vsub.f32 %v499, %v509
          %v512 = vmul.f32 %v510, 1.442695
          %v513 = vpow.pop %v512
          %v514 = vmul.f32 %v511, 1.442695
          %v515 = vpow.pop %v514
          %v516 = vld [vmem:[#allocation3] sm:$0xff]
          %v517 = vld [vmem:[#allocation3 + $0x8] sm:$0xff]
          %v518 = vmul.f32 %v513, %v516
          %v519 = vmul.f32 %v515, %v517
          %521 = vset.pattern.permute.xlu0 0
          %522 = vperm.xlu0 %521, %v508
          %v523 = vpop.permute.xlu0 %522
          %526 = vset.pattern.permute.xlu0 0
          %527 = vperm.xlu0 %526, %v509
          %v528 = vpop.permute.xlu0 %527
          %v530 = vsub.f32 %v494, %v523
          %v531 = vsub.f32 %v495, %v528
          %v532 = vmul.f32 %v530, 1.442695
          %v533 = vpow.pop %v532
          %v534 = vmul.f32 %v531, 1.442695
          %v535 = vpow.pop %v534
          %v536 = vsub.f32 %v496, %v523
          %v537 = vsub.f32 %v497, %v528
          %v538 = vmul.f32 %v536, 1.442695
          %v539 = vpow.pop %v538
          %v540 = vmul.f32 %v537, 1.442695
          %v541 = vpow.pop %v540
          %v542 = vadd.f32 %v533, %v539
          %v543 = vadd.f32 %v535, %v541
          %v544 = vsel %vm482, %v542, 0.0
          %545 = vadd.xlane.f32.xlu0 %v544
          %v546 = vpop.xlane.xlu0 %545
          %v547 = vsel %vm482, %v543, 0.0
          %548 = vadd.xlane.f32.xlu0 %v547
          %v549 = vpop.xlane.xlu0 %548
          %v550 = vadd.f32 %v518, %v546
          %v551 = vadd.f32 %v519, %v549
          %552 = vst.msk [vmem:[#allocation3] sm:$0xff] %vm491, %v550
          %553 = vst.msk [vmem:[#allocation3 + $0x8] sm:$0xff] %vm491, %v551
          %554 = vst.msk [vmem:[#allocation2] sm:$0xff] %vm491, %v508
          %555 = vst.msk [vmem:[#allocation2 + $0x8] sm:$0xff] %vm491, %v509
        $region52: #{tpu_custom_call.1} parent=31 // pred_fallthru
          _
        %p556 = pneg %p463
        // Predicated region
        $region53: #{tpu_custom_call.1} parent=31 // pred_check
          _
        $region54: #{tpu_custom_call.1} parent=31 // pred_check_branch
          %558 = sbr.rel (%p463) target = $region56
        $region55: #{tpu_custom_call.1} parent=31 // pred_region
          %v559 = vld [vmem:[#allocation2] sm:$0xff]
          %v560 = vld [vmem:[#allocation2 + $0x8] sm:$0xff]
          %v561 = vmax.f32 %v370, %v448
          %v562 = vmax.f32 %v375, %v453
          %vm563 = vcmask 64512
          %v564 = vsel %vm563, %v561, -inf
          %565 = vmax.xlane.f32.xlu0 %v564
          %v566 = vpop.xlane.xlu0 %565
          %v567 = vsel %vm563, %v562, -inf
          %568 = vmax.xlane.f32.xlu0 %v567
          %v569 = vpop.xlane.xlu0 %568
          %v570 = vmax.f32 %v559, %v566
          %v571 = vmax.f32 %v560, %v569
          %v572 = vsub.f32 %v559, %v570
          %v573 = vsub.f32 %v560, %v571
          %v574 = vmul.f32 %v572, 1.442695
          %v575 = vpow.pop %v574
          %v576 = vmul.f32 %v573, 1.442695
          %v577 = vpow.pop %v576
          %v578 = vld [vmem:[#allocation3] sm:$0xff]
          %v579 = vld [vmem:[#allocation3 + $0x8] sm:$0xff]
          %v580 = vmul.f32 %v575, %v578
          %v581 = vmul.f32 %v577, %v579
          %583 = vset.pattern.permute.xlu0 0
          %584 = vperm.xlu0 %583, %v570
          %v585 = vpop.permute.xlu0 %584
          %588 = vset.pattern.permute.xlu0 0
          %589 = vperm.xlu0 %588, %v571
          %v590 = vpop.permute.xlu0 %589
          %v592 = vsub.f32 %v370, %v585
          %v593 = vsub.f32 %v375, %v590
          %v594 = vmul.f32 %v592, 1.442695
          %v595 = vpow.pop %v594
          %v596 = vmul.f32 %v593, 1.442695
          %v597 = vpow.pop %v596
          %v598 = vsub.f32 %v448, %v585
          %v599 = vsub.f32 %v453, %v590
          %v600 = vmul.f32 %v598, 1.442695
          %v601 = vpow.pop %v600
          %v602 = vmul.f32 %v599, 1.442695
          %v603 = vpow.pop %v602
          %v604 = vadd.f32 %v595, %v601
          %v605 = vadd.f32 %v597, %v603
          %v606 = vsel %vm563, %v604, 0.0
          %607 = vadd.xlane.f32.xlu0 %v606
          %v608 = vpop.xlane.xlu0 %607
          %v609 = vsel %vm563, %v605, 0.0
          %610 = vadd.xlane.f32.xlu0 %v609
          %v611 = vpop.xlane.xlu0 %610
          %v612 = vadd.f32 %v580, %v608
          %v613 = vadd.f32 %v581, %v611
          %vm614 = vcmask 7168
          %615 = vst.msk [vmem:[#allocation3] sm:$0xff] %vm614, %v612
          %616 = vst.msk [vmem:[#allocation3 + $0x8] sm:$0xff] %vm614, %v613
          %617 = vst.msk [vmem:[#allocation2] sm:$0xff] %vm614, %v570
          %618 = vst.msk [vmem:[#allocation2 + $0x8] sm:$0xff] %vm614, %v571
        $region56: #{tpu_custom_call.1} parent=31 // pred_fallthru
          _
        %p619 = scmp.eq.s32.totalorder %s25, 3
        // Predicated region
        $region57: #{tpu_custom_call.1} parent=31 // pred_check
          %p620 = pneg %p619
        $region58: #{tpu_custom_call.1} parent=31 // pred_check_branch
          %622 = sbr.rel (%p620) target = $region60
        $region59: #{tpu_custom_call.1} parent=31 // pred_region
          %v623 = vld [vmem:[#allocation2] sm:$0xff]
          %v624 = vld [vmem:[#allocation2 + $0x8] sm:$0xff]
          %v625 = vld [vmem:[#allocation3] sm:$0xff]
          %v626 = vld [vmem:[#allocation3 + $0x8] sm:$0xff]
          %v627 = vlog2.pop %v625
          %v628 = vmul.f32 %v627, 0.6931472
          %v629 = vlog2.pop %v626
          %v630 = vmul.f32 %v629, 0.6931472
          %v631 = vadd.f32 %v623, %v628
          %v632 = vadd.f32 %v624, %v630
          %v633 = vld [vmem:[#allocation4] sm:$0xff]
          %v634 = vld [vmem:[#allocation4 + $0x8] sm:$0xff]
          %v635 = vsub.f32 %v631, %v633
          %v636 = vsub.f32 %v632, %v634
          %vm637 = vcmask 7168
          %638 = vst.msk [vmem:[%s274] sm:$0xff] %vm637, %v635
          %639 = vst.msk [vmem:[%s274 + $0x8] sm:$0xff] %vm637, %v636
        $region60: #{tpu_custom_call.1} parent=31 // pred_fallthru
          _
        %s640 = smul.u32 2, %s24
        %p641 = scmp.lt.s32.totalorder %s640, 3
        %s642 = scalar_select %p641, %s640, 3
        %s643 = smul.addr %s642, 8
        %s644 = scalar_lea.vmem %s3, %s643
        // Predicated region
        $region61: #{tpu_custom_call.1} parent=31 // pred_check
          %p645 = pneg %p128
        $region62: #{tpu_custom_call.1} parent=31 // pred_check_branch
          %647 = sbr.rel (%p645) target = $region64
        $region63: #{tpu_custom_call.1} parent=31 // pred_region
          %s648 = smul.u32 2, %s24
        $region64: #{tpu_custom_call.1} parent=31 // pred_fallthru
          _
      $region32: #{tpu_custom_call.1} parent=5 // pred_fallthru
        _
      %p649 = scmp.le.s32.totalorder 2, %s15
      // Predicated region
      $region65: #{tpu_custom_call.1} parent=5 // pred_check
        %p650 = pneg %p649
      $region66: #{tpu_custom_call.1} parent=5 // pred_check_branch
        %652 = sbr.rel (%p650) target = $region68
      $region67: #{tpu_custom_call.1} parent=5 // pred_region
        %s653 = ssub.s32 %s15, 2
        // Predicated region
        $region69: #{tpu_custom_call.1} parent=67 // pred_check
          %p654 = pneg %p134
        $region70: #{tpu_custom_call.1} parent=67 // pred_check_branch
          %656 = sbr.rel (%p654) target = $region72
        $region71: #{tpu_custom_call.1} parent=67 // pred_region
          %s657 = smul.u32 2, %s26
          %p658 = scmp.lt.s32.totalorder %s657, 3
          %s659 = scalar_select %p658, %s657, 3
          %s660 = smul.addr %s659, 8
          %s661 = scalar_lea.vmem %s3, %s660
        $region72: #{tpu_custom_call.1} parent=67 // pred_fallthru
          _
      $region68: #{tpu_custom_call.1} parent=5 // pred_fallthru
        _
    $region6: #{tpu_custom_call.1} parent=1 // loop_footer
      %s19 = sadd.s32 1, %s15
    $region7: #{tpu_custom_call.1} parent=1 // loop_footer_branch
      %14 = sbr.rel target = $region3
    $region8: #{tpu_custom_call.1} parent=1 // loop_exit
      _
    %662 = vsyncpa [#allocation6], 1
    %s663 = scalar_lea.sflag [#allocation6], 1
    %664 = vsyncpa %s663, 1
    %665 = vsyncpa [#allocation8], 1
    %s666 = scalar_lea.sflag [#allocation8], 1
    %667 = vsyncpa %s666, 1

</llo_original>
